<compile_context>
chip_gen: v6e
topology: v6e:2x2x1
jax: 0.10.0
libtpu: 0.0.40
codegen_flags: <defaults>
</compile_context>

<pallas_src>
import functools

import jax
import jax.numpy as jnp
from jax import lax
from jax.experimental import pallas as pl
from jax.experimental.pallas import tpu as pltpu

_TARGET_TILE_BYTES = 2 * 1024 * 1024      # per-step input-tile target (HBM roofline)
_FALLBACK_TILE_BYTES = 4 * 1024 * 1024    # per-step HW-chunk target in the two-pass path


def _vmem_capacity_bytes():
    """Physical per-core VMEM (v5e/v6e: 128 MiB, v7x: 64 MiB); conservative fallback."""
    try:
        cap = int(getattr(pltpu.get_tpu_info(), "vmem_capacity_bytes", 0))
        if cap > 0:
            return cap
    except Exception:
        pass
    return 64 * 1024 * 1024


def _round_up(x, m):
    return ((x + m - 1) // m) * m


# ---------------------------------------------------------------------------
# Single-pass kernel: pool + FC + sigmoid + rescale on a (bt, C, HW) batch tile
# ---------------------------------------------------------------------------
def _se_kernel(x_ref, w1_ref, w2_ref, o_ref, *, inv_hw):
    # x_ref/o_ref: (bt, C, HW)   w1_ref: (C_r, C)   w2_ref: (C, C_r)
    x = x_ref[...]
    # Squeeze: AdaptiveAvgPool2d(1).  Sum in f32 over the true spatial extent.
    y = jnp.sum(x, axis=-1, dtype=jnp.float32) * inv_hw              # (bt, C)
    # Excite: fc1 (no bias) + ReLU; contraction over C equals y @ w1.T.
    h = lax.dot_general(
        y, w1_ref[...].astype(jnp.float32),
        dimension_numbers=(((1,), (1,)), ((), ())),
        precision=lax.Precision.HIGHEST,
        preferred_element_type=jnp.float32)                          # (bt, C_r)
    h = jnp.maximum(h, 0.0)
    # fc2 (no bias) + sigmoid; equals h @ w2.T.
    s = jax.nn.sigmoid(
        lax.dot_general(
            h, w2_ref[...].astype(jnp.float32),
            dimension_numbers=(((1,), (1,)), ((), ())),
            precision=lax.Precision.HIGHEST,
            preferred_element_type=jnp.float32))                     # (bt, C)
    # Per-channel rescale of every spatial position, kept in the input dtype
    # (an f32 upcast of the whole tile would double VMEM pressure for nothing).
    o_ref[...] = (x * s.astype(x.dtype)[:, :, None]).astype(o_ref.dtype)


# ---------------------------------------------------------------------------
# Two-pass fallback kernels (huge (C, HW) feature maps)
# ---------------------------------------------------------------------------
def _sum_kernel(x_ref, o_ref, *, hw, thw):
    # x_ref: (1, C, thw)   o_ref: (1, C, 1) f32, resident across the HW axis.
    s = pl.program_id(1)

    @pl.when(s == 0)
    def _():
        o_ref[...] = jnp.zeros_like(o_ref)

    x = x_ref[...]
    # Mask lanes past the true spatial extent (the last chunk may be partial and
    # its out-of-bounds lanes hold unspecified data).
    lane = s * thw + lax.broadcasted_iota(jnp.int32, x.shape, 2)
    x = jnp.where(lane < hw, x, jnp.zeros_like(x))
    o_ref[...] += jnp.sum(x, axis=-1, keepdims=True, dtype=jnp.float32)


def _rescale_kernel(s_ref, x_ref, o_ref):
    # s_ref: (1, C, 1) f32   x_ref/o_ref: (1, C, thw)
    x = x_ref[...]
    o_ref[...] = (x * s_ref[...].astype(x.dtype)).astype(o_ref.dtype)


def _two_pass(x_flat, w1, w2, hw, tile_budget, vmem_cap, hw_tile):
    B, C, _ = x_flat.shape
    itemsize = x_flat.dtype.itemsize

    if hw_tile is None:
        thw_budget = max(128, (tile_budget // (4 * C * itemsize)) // 128 * 128)
        thw_target = max(128, (_FALLBACK_TILE_BYTES // (C * itemsize)) // 128 * 128)
        thw = min(thw_budget, thw_target, _round_up(hw, 128))
    else:
        thw = max(128, (int(hw_tile) // 128) * 128)
    n_hw = -(-hw // thw)

    tile_bytes = C * thw * itemsize
    vmem_limit = int(min(vmem_cap - (8 << 20),
                         max(32 << 20, 4 * tile_bytes + (2 << 20))))

    # Pass 1: per-(b, c) spatial sums, HW tiled with an "arbitrary" reduction axis.
    sums = pl.pallas_call(
        functools.partial(_sum_kernel, hw=hw, thw=thw),
        out_shape=jax.ShapeDtypeStruct((B, C, 1), jnp.float32),
        grid_spec=pltpu.PrefetchScalarGridSpec(
            num_scalar_prefetch=0,
            grid=(B, n_hw),
            in_specs=[pl.BlockSpec((1, C, thw), lambda b, s: (b, 0, s))],
            out_specs=pl.BlockSpec((1, C, 1), lambda b, s: (b, 0, 0)),
        ),
        compiler_params=pltpu.CompilerParams(
            dimension_semantics=("parallel", "arbitrary"),
            vmem_limit_bytes=vmem_limit,
        ),
    )(x_flat)

    # Tiny FCs + sigmoid in plain JAX (negligible vs the two streams of x).
    y = sums[:, :, 0] * (1.0 / hw)                                            # (B, C)
    h = jnp.maximum(
        jnp.dot(y, w1.T.astype(jnp.float32), precision=lax.Precision.HIGHEST), 0.0)
    scale = jax.nn.sigmoid(
        jnp.dot(h, w2.T.astype(jnp.float32), precision=lax.Precision.HIGHEST))
    scale = scale[:, :, None]                                                 # (B, C, 1)

    # Pass 2: re-stream x and rescale, tiled over (batch, HW).
    out_flat = pl.pallas_call(
        _rescale_kernel,
        out_shape=jax.ShapeDtypeStruct(x_flat.shape, x_flat.dtype),
        grid_spec=pltpu.PrefetchScalarGridSpec(
            num_scalar_prefetch=0,
            grid=(B, n_hw),
            in_specs=[
                pl.BlockSpec((1, C, 1), lambda b, s: (b, 0, 0)),
                pl.BlockSpec((1, C, thw), lambda b, s: (b, 0, s)),
            ],
            out_specs=pl.BlockSpec((1, C, thw), lambda b, s: (b, 0, s)),
        ),
        compiler_params=pltpu.CompilerParams(
            dimension_semantics=("parallel", "parallel"),
            vmem_limit_bytes=vmem_limit,
        ),
    )(scale, x_flat)
    return out_flat


# ---------------------------------------------------------------------------
# Tiling heuristic + public wrapper
# ---------------------------------------------------------------------------
def _pick_batch_tile(B, per_sample_bytes, tile_budget):
    """Largest divisor of B that (a) fits double-buffered in/out tiles in the VMEM
    budget, (b) reaches the ~2 MiB per-step tile target, and (c) still keeps >= 4
    grid steps when that does not shrink tiles below the target (pipelining /
    v7x megacore sharding of the batch axis)."""
    max_bt = max(1, min(B, tile_budget // (4 * per_sample_bytes)))
    target_bt = max(1, -(-_TARGET_TILE_BYTES // per_sample_bytes))
    cap = min(max(target_bt, B // 4), max_bt)
    cap = max(1, min(cap, B))
    for cand in range(cap, 0, -1):
        if B % cand == 0:
            return cand
    return 1


@functools.partial(jax.jit, static_argnames=("two_pass", "hw_tile"))
def channel_attention(x, w1, w2, *, two_pass=False, hw_tile=None):
    """SE forward. x: (B, C, H, W); w1: (C//r, C); w2: (C, C//r) (PyTorch layout)."""
    B, C, H, W = x.shape
    HW = H * W
    itemsize = x.dtype.itemsize
    x_flat = x.reshape(B, C, HW)

    vmem_cap = _vmem_capacity_bytes()
    tile_budget = (vmem_cap * 3) // 4            # headroom for scratch/sems/weights
    w_bytes = (w1.size + w2.size) * w1.dtype.itemsize
    tile_budget_tiles = max(0, tile_budget - 4 * w_bytes)
    per_sample = C * HW * itemsize

    if two_pass or 4 * per_sample > tile_budget_tiles:
        out_flat = _two_pass(x_flat, w1, w2, HW, tile_budget, vmem_cap, hw_tile)
        return out_flat.reshape(B, C, H, W)

    bt = _pick_batch_tile(B, per_sample, tile_budget_tiles)
    tile_bytes = bt * per_sample
    vmem_limit = int(min(vmem_cap - (8 << 20),
                         max(32 << 20, 4 * tile_bytes + 4 * w_bytes + (2 << 20))))
    c_r = w1.shape[0]
    cost = pl.CostEstimate(
        flops=int(2 * B * C * HW + 4 * B * C * c_r),
        transcendentals=int(B * C),
        bytes_accessed=int(2 * B * C * HW * itemsize + 2 * w_bytes))

    kernel = functools.partial(_se_kernel, inv_hw=1.0 / HW)
    out_flat = pl.pallas_call(
        kernel,
        out_shape=jax.ShapeDtypeStruct((B, C, HW), x.dtype),
        grid_spec=pltpu.PrefetchScalarGridSpec(
            num_scalar_prefetch=0,
            grid=(B // bt,),
            in_specs=[
                pl.BlockSpec((bt, C, HW), lambda b: (b, 0, 0)),
                # Weights are a few KiB; default double-buffering is noise.
                pl.BlockSpec(w1.shape, lambda b: (0, 0)),
                pl.BlockSpec(w2.shape, lambda b: (0, 0)),
            ],
            out_specs=pl.BlockSpec((bt, C, HW), lambda b: (b, 0, 0)),
        ),
        compiler_params=pltpu.CompilerParams(
            dimension_semantics=("parallel",),   # v7x: shard batch over both TCs
            vmem_limit_bytes=vmem_limit,
        ),
        cost_estimate=cost,
    )(x_flat, w1, w2)

    return out_flat.reshape(B, C, H, W)


# ---------------------------------------------------------------------------
# Reference + tests
# ---------------------------------------------------------------------------
def _reference(x, w1, w2):
    """Pure-JAX reference identical to the PyTorch forward (true f32 matmuls)."""
    y = jnp.mean(x, axis=(2, 3))                                            # (B, C)
    y = jnp.maximum(jnp.dot(y, w1.T, precision=lax.Precision.HIGHEST), 0.0)  # (B, C_r)
    y = jax.nn.sigmoid(jnp.dot(y, w2.T, precision=lax.Precision.HIGHEST))    # (B, C)
    return x * y[:, :, None, None]


if __name__ == "__main__":
    key = jax.random.PRNGKey(0)

    def run_case(B, C, H, W, reduction, subkey, **kw):
        C_r = max(1, C // reduction)
        kx, k1, k2 = jax.random.split(subkey, 3)
        x = jax.random.normal(kx, (B, C, H, W), dtype=jnp.float32)
        # Deterministic synthetic weights (PyTorch nn.Linear layout: (out, in)).
        w1 = jax.random.normal(k1, (C_r, C), dtype=jnp.float32) * (1.0 / C) ** 0.5
        w2 = jax.random.normal(k2, (C, C_r), dtype=jnp.float32) * (1.0 / C_r) ** 0.5
        out = channel_attention(x, w1, w2, **kw)
        jax.block_until_ready(out)
        ref = _reference(x, w1, w2)
        assert out.shape == (B, C, H, W)
        assert jnp.allclose(out, ref, atol=3e-5, rtol=3e-5), (
            f"mismatch vs reference for shape {(B, C, H, W)} kw={kw}")

    k_a, k_b, k_c = jax.random.split(key, 3)
    # Main config (HW = 256, 128-aligned), single-pass path.
    run_case(B=2, C=32, H=16, W=16, reduction=16, subkey=k_a)
    # Non-128-multiple spatial size (HW = 49): unpadded, lane-masked stores.
    run_case(B=4, C=32, H=7, W=7, reduction=8, subkey=k_b)
    # Exercise the two-pass (huge-feature-map) fallback at a small shape, with an
    # HW tile giving multiple chunks plus a ragged final chunk (400 = 3*128 + 16).
    run_case(B=2, C=16, H=20, W=20, reduction=4, subkey=k_c, two_pass=True, hw_tile=128)

    print("KERNEL_OK")
</pallas_src>

<mosaic_0001>
module attributes {stable_mosaic.version = 11 : i64} {
  func.func @_se_kernel(%arg0: i32, %arg1: memref<2x32x256xf32, #tpu.memory_space<vmem>>, %arg2: memref<2x32xf32, #tpu.memory_space<vmem>>, %arg3: memref<32x2xf32, #tpu.memory_space<vmem>>, %arg4: memref<2x32x256xf32, #tpu.memory_space<vmem>>) attributes {dimension_semantics = [#tpu.dimension_semantics<parallel>], iteration_bounds = array<i64: 1>, scalar_prefetch = 0 : i64, scratch_operands = 0 : i64, tpu.core_type = #tpu.core_type<tc>, window_params = [{transform_indices = @transform_0, window_bounds = array<i64: 2, 32, 256>}, {pipeline_mode = #tpu.pipeline_mode<synchronous>, transform_indices = @transform_1, window_bounds = array<i64: 2, 32>}, {pipeline_mode = #tpu.pipeline_mode<synchronous>, transform_indices = @transform_2, window_bounds = array<i64: 32, 2>}, {transform_indices = @transform_3, window_bounds = array<i64: 2, 32, 256>}]} {
    %c0 = arith.constant 0 : index
    %c0_0 = arith.constant 0 : index
    %c0_1 = arith.constant 0 : index
    %0 = vector.load %arg1[%c0, %c0_0, %c0_1] : memref<2x32x256xf32, #tpu.memory_space<vmem>>, vector<2x32x256xf32>
    %cst = arith.constant dense<0.000000e+00> : vector<2x32xf32>
    %1 = vector.multi_reduction <add>, %0, %cst [2] : vector<2x32x256xf32> to vector<2x32xf32>
    %cst_2 = arith.constant 3.906250e-03 : f32
    %2 = vector.broadcast %cst_2 : f32 to vector<2x32xf32>
    %3 = arith.mulf %1, %2 : vector<2x32xf32>
    %c0_3 = arith.constant 0 : index
    %c0_4 = arith.constant 0 : index
    %4 = vector.load %arg2[%c0_3, %c0_4] : memref<2x32xf32, #tpu.memory_space<vmem>>, vector<2x32xf32>
    %cst_5 = arith.constant dense<0.000000e+00> : vector<2x2xf32>
    %5 = tpu.matmul %3, %4, %cst_5 {dimension_numbers = #tpu.dot_dimension_numbers<[1], [1], [0], [0], [0, 0, 1, 0], [], []>, precision = #tpu.contract_precision<fp32>} : vector<2x32xf32>, vector<2x32xf32>, vector<2x2xf32> -> vector<2x2xf32>
    %cst_6 = arith.constant 0.000000e+00 : f32
    %6 = vector.broadcast %cst_6 : f32 to vector<2x2xf32>
    %7 = arith.maximumf %5, %6 : vector<2x2xf32>
    %c0_7 = arith.constant 0 : index
    %c0_8 = arith.constant 0 : index
    %8 = vector.load %arg3[%c0_7, %c0_8] : memref<32x2xf32, #tpu.memory_space<vmem>>, vector<32x2xf32>
    %cst_9 = arith.constant dense<0.000000e+00> : vector<2x32xf32>
    %9 = tpu.matmul %7, %8, %cst_9 {dimension_numbers = #tpu.dot_dimension_numbers<[1], [1], [0], [0], [0, 0, 1, 0], [], []>, precision = #tpu.contract_precision<fp32>} : vector<2x2xf32>, vector<32x2xf32>, vector<2x32xf32> -> vector<2x32xf32>
    %10 = arith.negf %9 : vector<2x32xf32>
    %11 = math.exp %10 : vector<2x32xf32>
    %cst_10 = arith.constant 1.000000e+00 : f32
    %12 = vector.broadcast %cst_10 : f32 to vector<2x32xf32>
    %13 = arith.addf %12, %11 : vector<2x32xf32>
    %14 = arith.divf %12, %13 : vector<2x32xf32>
    %15 = vector.shape_cast %14 : vector<2x32xf32> to vector<2x32x1xf32>
    %16 = vector.broadcast %15 : vector<2x32x1xf32> to vector<2x32x256xf32>
    %17 = arith.mulf %0, %16 : vector<2x32x256xf32>
    %c0_11 = arith.constant 0 : index
    %c0_12 = arith.constant 0 : index
    %c0_13 = arith.constant 0 : index
    %18 = vector.load %arg4[%c0_11, %c0_12, %c0_13] : memref<2x32x256xf32, #tpu.memory_space<vmem>>, vector<2x32x256xf32>
    tpu.vector_store %arg4[%c0_11, %c0_12, %c0_13], %17 {strides = array<i32>} : memref<2x32x256xf32, #tpu.memory_space<vmem>>, vector<2x32x256xf32>,
    return
  }
  func.func @transform_0(%arg0: i32) -> (i32, i32, i32) {
    %c0_i32 = arith.constant 0 : i32
    %c0_i32_0 = arith.constant 0 : i32
    %c0_i32_1 = arith.constant 0 : i32
    return %arg0, %c0_i32, %c0_i32_0 : i32, i32, i32
  }
  func.func @transform_1(%arg0: i32) -> (i32, i32) {
    %c0_i32 = arith.constant 0 : i32
    %c0_i32_0 = arith.constant 0 : i32
    %c0_i32_1 = arith.constant 0 : i32
    return %c0_i32, %c0_i32_0 : i32, i32
  }
  func.func @transform_2(%arg0: i32) -> (i32, i32) {
    %c0_i32 = arith.constant 0 : i32
    %c0_i32_0 = arith.constant 0 : i32
    %c0_i32_1 = arith.constant 0 : i32
    return %c0_i32, %c0_i32_0 : i32, i32
  }
  func.func @transform_3(%arg0: i32) -> (i32, i32, i32) {
    %c0_i32 = arith.constant 0 : i32
    %c0_i32_0 = arith.constant 0 : i32
    %c0_i32_1 = arith.constant 0 : i32
    return %arg0, %c0_i32, %c0_i32_0 : i32, i32, i32
  }
}

</mosaic_0001>

<llo_original>
// kernel: channel_attention.1
$region0: #{channel_attention.1}
  #allocation0 [shape = 'u32[]', space=smem, size = 0x4, offset = 0x4, fixed_abs, tag = 'smem constant byte address 0x4 - core index']
  #allocation1 [shape = 'u32[144,128]{1,0:T(1,128)}', space=vmem, size = 0x12000, scoped, tag = 'internal scratch']
  %s0 = inlined_call_operand.vmem [shape: f32[2,32,256], index: 0, kind: input, shape index: {}]
  %s1 = inlined_call_operand.vmem [shape: f32[2,32], index: 1, kind: input, shape index: {}]
  %s2 = inlined_call_operand.vmem [shape: f32[32,2], index: 2, kind: input, shape index: {}]
  %s3 = inlined_call_operand.vmem [shape: f32[2,32,256], index: 3, kind: output, shape index: {}]
  %s4 = sld [smem:[#allocation0]]
  $region22: #{channel_attention.1} parent=0
    _
  %s6 = ssub.s32 1, %s4
  %s7 = scalar_select 0, %s6, %s4
  // Predicated region
  $region2: #{channel_attention.1} parent=0 // pred_check
    _
  $region3: #{channel_attention.1} parent=0 // pred_check_branch
    %9 = sbr.rel (0) target = $region5
  $region4: #{channel_attention.1} parent=0 // pred_region
    _
  $region5: #{channel_attention.1} parent=0 // pred_fallthru
    _
  // Predicated region
  $region6: #{channel_attention.1} parent=0 // pred_check
    _
  $region7: #{channel_attention.1} parent=0 // pred_check_branch
    %11 = sbr.rel (0) target = $region9
  $region8: #{channel_attention.1} parent=0 // pred_region
    _
  $region9: #{channel_attention.1} parent=0 // pred_fallthru
    _
  // Predicated region
  $region10: #{channel_attention.1} parent=0 // pred_check
    _
  $region11: #{channel_attention.1} parent=0 // pred_check_branch
    %13 = sbr.rel (0) target = $region13
  $region12: #{channel_attention.1} parent=0 // pred_region
    _
  $region13: #{channel_attention.1} parent=0 // pred_fallthru
    _
  %v14 = vld [vmem:[%s0] sm:$0xff]
  %v15 = vld [vmem:[%s0 + $0x8] sm:$0xff]
  %v16 = vld [vmem:[%s0 + $0x10] sm:$0xff]
  %v17 = vld [vmem:[%s0 + $0x18] sm:$0xff]
  %v18 = vld [vmem:[%s0 + $0x20] sm:$0xff]
  %v19 = vld [vmem:[%s0 + $0x28] sm:$0xff]
  %v20 = vld [vmem:[%s0 + $0x30] sm:$0xff]
  %v21 = vld [vmem:[%s0 + $0x38] sm:$0xff]
  %v22 = vld [vmem:[%s0 + $0x40] sm:$0xff]
  %v23 = vld [vmem:[%s0 + $0x48] sm:$0xff]
  %v24 = vld [vmem:[%s0 + $0x50] sm:$0xff]
  %v25 = vld [vmem:[%s0 + $0x58] sm:$0xff]
  %v26 = vld [vmem:[%s0 + $0x60] sm:$0xff]
  %v27 = vld [vmem:[%s0 + $0x68] sm:$0xff]
  %v28 = vld [vmem:[%s0 + $0x70] sm:$0xff]
  %v29 = vld [vmem:[%s0 + $0x78] sm:$0xff]
  %v30 = vadd.f32 %v14, %v15
  %31 = vadd.xlane.f32.xlu0 %v30
  %v32 = vpop.xlane.xlu0 %31
  %v33 = vadd.f32 %v16, %v17
  %34 = vadd.xlane.f32.xlu0 %v33
  %v35 = vpop.xlane.xlu0 %34
  %v36 = vadd.f32 %v18, %v19
  %37 = vadd.xlane.f32.xlu0 %v36
  %v38 = vpop.xlane.xlu0 %37
  %v39 = vadd.f32 %v20, %v21
  %40 = vadd.xlane.f32.xlu0 %v39
  %v41 = vpop.xlane.xlu0 %40
  %v42 = vadd.f32 %v22, %v23
  %43 = vadd.xlane.f32.xlu0 %v42
  %v44 = vpop.xlane.xlu0 %43
  %v45 = vadd.f32 %v24, %v25
  %46 = vadd.xlane.f32.xlu0 %v45
  %v47 = vpop.xlane.xlu0 %46
  %v48 = vadd.f32 %v26, %v27
  %49 = vadd.xlane.f32.xlu0 %v48
  %v50 = vpop.xlane.xlu0 %49
  %v51 = vadd.f32 %v28, %v29
  %52 = vadd.xlane.f32.xlu0 %v51
  %v53 = vpop.xlane.xlu0 %52
  %v54 = vmul.f32 %v32, 0.00390625
  %v55 = vmul.f32 %v35, 0.00390625
  %v56 = vmul.f32 %v38, 0.00390625
  %v57 = vmul.f32 %v41, 0.00390625
  %v58 = vmul.f32 %v44, 0.00390625
  %v59 = vmul.f32 %v47, 0.00390625
  %v60 = vmul.f32 %v50, 0.00390625
  %v61 = vmul.f32 %v53, 0.00390625
  %v62 = vld [vmem:[%s1] sm:$0x3]
  %v71 = vlaneseq
  %v72 = vand.u32 %v71, 127
  %v73 = vlaneseq
  %v74 = vshrl.u32 %v73, 7
  %v75 = vsub.s32 %v72, %v74
  %v76 = vrot.slane %v54, %v75
  %v77 = vadd.s32 %v72, 4294967288
  %v78 = vlaneseq
  %v79 = vshrl.u32 %v78, 7
  %v80 = vsub.s32 %v77, %v79
  %v81 = vrot.slane %v55, %v80
  %vm82 = vcmask 130112
  %v83 = vsel %vm82, %v81, %v76
  %v84 = vadd.s32 %v72, 4294967280
  %v85 = vlaneseq
  %v86 = vshrl.u32 %v85, 7
  %v87 = vsub.s32 %v84, %v86
  %v88 = vrot.slane %v56, %v87
  %vm89 = vcmask 195712
  %v90 = vsel %vm89, %v88, %v83
  %v91 = vadd.s32 %v72, 4294967272
  %v92 = vlaneseq
  %v93 = vshrl.u32 %v92, 7
  %v94 = vsub.s32 %v91, %v93
  %v95 = vrot.slane %v57, %v94
  %vm96 = vcmask 261312
  %v97 = vsel %vm96, %v95, %v90
  %v98 = vlaneseq
  %v99 = vshrl.u32 %v98, 7
  %v100 = vsub.s32 %v72, %v99
  %v101 = vrot.slane %v58, %v100
  %v102 = vlaneseq
  %v103 = vshrl.u32 %v102, 7
  %v104 = vsub.s32 %v77, %v103
  %v105 = vrot.slane %v59, %v104
  %v106 = vsel %vm82, %v105, %v101
  %v107 = vlaneseq
  %v108 = vshrl.u32 %v107, 7
  %v109 = vsub.s32 %v84, %v108
  %v110 = vrot.slane %v60, %v109
  %v111 = vsel %vm89, %v110, %v106
  %v112 = vlaneseq
  %v113 = vshrl.u32 %v112, 7
  %v114 = vsub.s32 %v91, %v113
  %v115 = vrot.slane %v61, %v114
  %v116 = vsel %vm96, %v115, %v111
  %vm117 = vcmask 1041409
  %v118 = vsel %vm117, %v116, %v97
  %vm119 = vcmask 261120
  %v120 = vsel %vm119, %v118, 0
  %v123 = vsel %vm119, %v62, 0
  %125 = vmatprep.subr.mxu0 0.0
  %126 = vmatpush1.xpose.msra.mxu0 0.0
  %127 = vmatprep.subr.mxu0 0.0
  %128 = vmatpush1.xpose.msra.mxu0 0.0
  %129 = vmatprep.subr.mxu0 0.0
  %130 = vmatpush1.xpose.msra.mxu0 0.0
  %131 = vmatprep.subr.mxu0 0.0
  %132 = vmatpush1.xpose.msra.mxu0 0.0
  %133 = vmatprep.subr.mxu0 0.0
  %134 = vmatpush1.xpose.msra.mxu0 0.0
  %135 = vmatprep.subr.mxu0 0.0
  %136 = vmatpush1.xpose.msra.mxu0 0.0
  %137 = vmatprep.subr.mxu0 0.0
  %138 = vmatpush1.xpose.msra.mxu0 0.0
  %139 = vmatprep.subr.mxu0 0.0
  %140 = vmatpush1.xpose.msra.mxu0 0.0
  %141 = vmatprep.subr.mxu0 0.0
  %142 = vmatpush1.xpose.msra.mxu0 0.0
  %143 = vmatprep.subr.mxu0 0.0
  %144 = vmatpush1.xpose.msra.mxu0 0.0
  %145 = vmatprep.subr.mxu0 0.0
  %146 = vmatpush1.xpose.msra.mxu0 0.0
  %147 = vmatprep.subr.mxu0 0.0
  %148 = vmatpush1.xpose.msra.mxu0 0.0
  %149 = vmatprep.subr.mxu0 0.0
  %150 = vmatpush1.xpose.msra.mxu0 0.0
  %151 = vmatprep.subr.mxu0 0.0
  %152 = vmatpush1.xpose.msra.mxu0 0.0
  %153 = vmatprep.subr.mxu0 0.0
  %154 = vmatpush1.xpose.msra.mxu0 0.0
  %155 = vmatprep.subr.mxu0 0.0
  %v156 = vand.u32 %v123, 4294901760
  %157 = vmatpush1.xpose.msra.mxu0 %v156
  %158 = vmatprep.subr.mxu0 0.0
  %159 = vmatpush2.xpose.msra.mxu0 0.0
  %160 = vmatprep.subr.mxu0 0.0
  %161 = vmatpush2.xpose.msra.mxu0 0.0
  %162 = vmatprep.subr.mxu0 0.0
  %163 = vmatpush2.xpose.msra.mxu0 0.0
  %164 = vmatprep.subr.mxu0 0.0
  %165 = vmatpush2.xpose.msra.mxu0 0.0
  %166 = vmatprep.subr.mxu0 0.0
  %167 = vmatpush2.xpose.msra.mxu0 0.0
  %168 = vmatprep.subr.mxu0 0.0
  %169 = vmatpush2.xpose.msra.mxu0 0.0
  %170 = vmatprep.subr.mxu0 0.0
  %171 = vmatpush2.xpose.msra.mxu0 0.0
  %172 = vmatprep.subr.mxu0 0.0
  %173 = vmatpush2.xpose.msra.mxu0 0.0
  %174 = vmatprep.subr.mxu0 0.0
  %175 = vmatpush2.xpose.msra.mxu0 0.0
  %176 = vmatprep.subr.mxu0 0.0
  %177 = vmatpush2.xpose.msra.mxu0 0.0
  %178 = vmatprep.subr.mxu0 0.0
  %179 = vmatpush2.xpose.msra.mxu0 0.0
  %180 = vmatprep.subr.mxu0 0.0
  %181 = vmatpush2.xpose.msra.mxu0 0.0
  %182 = vmatprep.subr.mxu0 0.0
  %183 = vmatpush2.xpose.msra.mxu0 0.0
  %184 = vmatprep.subr.mxu0 0.0
  %185 = vmatpush2.xpose.msra.mxu0 0.0
  %186 = vmatprep.subr.mxu0 0.0
  %187 = vmatpush2.xpose.msra.mxu0 0.0
  %188 = vmatprep.subr.mxu0 0.0
  %189 = vmatpush2.xpose.msra.mxu0 0.0
  %190 = vmatprep.mubr.f32.mxu0 0.0
  %v191 = vand.u32 %v120, 4294901760
  %v192 = vsub.f32 %v120, %v191
  %v193 = vand.u32 %v192, 4294901760
  %v194 = vsub.f32 %v192, %v193
  %v195 = vand.u32 %v194, 4294901760
  %196 = vmatmul.mubr.f32.gmra.mxu0 %v195
  %v197 = vpop.f32.mrf.mxu0
  %v198 = vadd.f32 0.0, %v197
  %v199 = vpop.f32.mrf.mxu0
  %200 = vdwg.mxu0
  %201 = vmatprep.subr.mxu0 0.0
  %202 = vmatpush1.xpose.msra.mxu0 0.0
  %203 = vmatprep.subr.mxu0 0.0
  %204 = vmatpush1.xpose.msra.mxu0 0.0
  %205 = vmatprep.subr.mxu0 0.0
  %206 = vmatpush1.xpose.msra.mxu0 0.0
  %207 = vmatprep.subr.mxu0 0.0
  %208 = vmatpush1.xpose.msra.mxu0 0.0
  %209 = vmatprep.subr.mxu0 0.0
  %210 = vmatpush1.xpose.msra.mxu0 0.0
  %211 = vmatprep.subr.mxu0 0.0
  %212 = vmatpush1.xpose.msra.mxu0 0.0
  %213 = vmatprep.subr.mxu0 0.0
  %214 = vmatpush1.xpose.msra.mxu0 0.0
  %215 = vmatprep.subr.mxu0 0.0
  %216 = vmatpush1.xpose.msra.mxu0 0.0
  %217 = vmatprep.subr.mxu0 0.0
  %218 = vmatpush1.xpose.msra.mxu0 0.0
  %219 = vmatprep.subr.mxu0 0.0
  %220 = vmatpush1.xpose.msra.mxu0 0.0
  %221 = vmatprep.subr.mxu0 0.0
  %222 = vmatpush1.xpose.msra.mxu0 0.0
  %223 = vmatprep.subr.mxu0 0.0
  %224 = vmatpush1.xpose.msra.mxu0 0.0
  %225 = vmatprep.subr.mxu0 0.0
  %226 = vmatpush1.xpose.msra.mxu0 0.0
  %227 = vmatprep.subr.mxu0 0.0
  %228 = vmatpush1.xpose.msra.mxu0 0.0
  %229 = vmatprep.subr.mxu0 0.0
  %230 = vmatpush1.xpose.msra.mxu0 0.0
  %231 = vmatprep.subr.mxu0 0.0
  %v232 = vand.u32 %v123, 4294901760
  %v233 = vsub.f32 %v123, %v232
  %v234 = vand.u32 %v233, 4294901760
  %v235 = vsub.f32 %v233, %v234
  %v236 = vand.u32 %v235, 4294901760
  %237 = vmatpush1.xpose.msra.mxu0 %v236
  %238 = vmatprep.subr.mxu0 0.0
  %239 = vmatpush2.xpose.msra.mxu0 0.0
  %240 = vmatprep.subr.mxu0 0.0
  %241 = vmatpush2.xpose.msra.mxu0 0.0
  %242 = vmatprep.subr.mxu0 0.0
  %243 = vmatpush2.xpose.msra.mxu0 0.0
  %244 = vmatprep.subr.mxu0 0.0
  %245 = vmatpush2.xpose.msra.mxu0 0.0
  %246 = vmatprep.subr.mxu0 0.0
  %247 = vmatpush2.xpose.msra.mxu0 0.0
  %248 = vmatprep.subr.mxu0 0.0
  %249 = vmatpush2.xpose.msra.mxu0 0.0
  %250 = vmatprep.subr.mxu0 0.0
  %251 = vmatpush2.xpose.msra.mxu0 0.0
  %252 = vmatprep.subr.mxu0 0.0
  %253 = vmatpush2.xpose.msra.mxu0 0.0
  %254 = vmatprep.subr.mxu0 0.0
  %255 = vmatpush2.xpose.msra.mxu0 0.0
  %256 = vmatprep.subr.mxu0 0.0
  %257 = vmatpush2.xpose.msra.mxu0 0.0
  %258 = vmatprep.subr.mxu0 0.0
  %259 = vmatpush2.xpose.msra.mxu0 0.0
  %260 = vmatprep.subr.mxu0 0.0
  %261 = vmatpush2.xpose.msra.mxu0 0.0
  %262 = vmatprep.subr.mxu0 0.0
  %263 = vmatpush2.xpose.msra.mxu0 0.0
  %264 = vmatprep.subr.mxu0 0.0
  %265 = vmatpush2.xpose.msra.mxu0 0.0
  %266 = vmatprep.subr.mxu0 0.0
  %267 = vmatpush2.xpose.msra.mxu0 0.0
  %268 = vmatprep.subr.mxu0 0.0
  %269 = vmatpush2.xpose.msra.mxu0 0.0
  %270 = vmatprep.mubr.f32.mxu0 0.0
  %v271 = vand.u32 %v120, 4294901760
  %272 = vmatmul.mubr.f32.gmra.mxu0 %v271
  %v273 = vpop.f32.mrf.mxu0
  %v274 = vadd.f32 %v198, %v273
  %v275 = vpop.f32.mrf.mxu0
  %276 = vdwg.mxu0
  %277 = vmatprep.subr.mxu0 0.0
  %278 = vmatpush1.xpose.msra.mxu0 0.0
  %279 = vmatprep.subr.mxu0 0.0
  %280 = vmatpush1.xpose.msra.mxu0 0.0
  %281 = vmatprep.subr.mxu0 0.0
  %282 = vmatpush1.xpose.msra.mxu0 0.0
  %283 = vmatprep.subr.mxu0 0.0
  %284 = vmatpush1.xpose.msra.mxu0 0.0
  %285 = vmatprep.subr.mxu0 0.0
  %286 = vmatpush1.xpose.msra.mxu0 0.0
  %287 = vmatprep.subr.mxu0 0.0
  %288 = vmatpush1.xpose.msra.mxu0 0.0
  %289 = vmatprep.subr.mxu0 0.0
  %290 = vmatpush1.xpose.msra.mxu0 0.0
  %291 = vmatprep.subr.mxu0 0.0
  %292 = vmatpush1.xpose.msra.mxu0 0.0
  %293 = vmatprep.subr.mxu0 0.0
  %294 = vmatpush1.xpose.msra.mxu0 0.0
  %295 = vmatprep.subr.mxu0 0.0
  %296 = vmatpush1.xpose.msra.mxu0 0.0
  %297 = vmatprep.subr.mxu0 0.0
  %298 = vmatpush1.xpose.msra.mxu0 0.0
  %299 = vmatprep.subr.mxu0 0.0
  %300 = vmatpush1.xpose.msra.mxu0 0.0
  %301 = vmatprep.subr.mxu0 0.0
  %302 = vmatpush1.xpose.msra.mxu0 0.0
  %303 = vmatprep.subr.mxu0 0.0
  %304 = vmatpush1.xpose.msra.mxu0 0.0
  %305 = vmatprep.subr.mxu0 0.0
  %306 = vmatpush1.xpose.msra.mxu0 0.0
  %307 = vmatprep.subr.mxu0 0.0
  %v308 = vand.u32 %v123, 4294901760
  %v309 = vsub.f32 %v123, %v308
  %310 = vmatpush1.xpose.msra.mxu0 %v309
  %311 = vmatprep.subr.mxu0 0.0
  %312 = vmatpush2.xpose.msra.mxu0 0.0
  %313 = vmatprep.subr.mxu0 0.0
  %314 = vmatpush2.xpose.msra.mxu0 0.0
  %315 = vmatprep.subr.mxu0 0.0
  %316 = vmatpush2.xpose.msra.mxu0 0.0
  %317 = vmatprep.subr.mxu0 0.0
  %318 = vmatpush2.xpose.msra.mxu0 0.0
  %319 = vmatprep.subr.mxu0 0.0
  %320 = vmatpush2.xpose.msra.mxu0 0.0
  %321 = vmatprep.subr.mxu0 0.0
  %322 = vmatpush2.xpose.msra.mxu0 0.0
  %323 = vmatprep.subr.mxu0 0.0
  %324 = vmatpush2.xpose.msra.mxu0 0.0
  %325 = vmatprep.subr.mxu0 0.0
  %326 = vmatpush2.xpose.msra.mxu0 0.0
  %327 = vmatprep.subr.mxu0 0.0
  %328 = vmatpush2.xpose.msra.mxu0 0.0
  %329 = vmatprep.subr.mxu0 0.0
  %330 = vmatpush2.xpose.msra.mxu0 0.0
  %331 = vmatprep.subr.mxu0 0.0
  %332 = vmatpush2.xpose.msra.mxu0 0.0
  %333 = vmatprep.subr.mxu0 0.0
  %334 = vmatpush2.xpose.msra.mxu0 0.0
  %335 = vmatprep.subr.mxu0 0.0
  %336 = vmatpush2.xpose.msra.mxu0 0.0
  %337 = vmatprep.subr.mxu0 0.0
  %338 = vmatpush2.xpose.msra.mxu0 0.0
  %339 = vmatprep.subr.mxu0 0.0
  %340 = vmatpush2.xpose.msra.mxu0 0.0
  %341 = vmatprep.subr.mxu0 0.0
  %342 = vmatpush2.xpose.msra.mxu0 0.0
  %343 = vmatprep.mubr.f32.mxu0 0.0
  %v344 = vand.u32 %v120, 4294901760
  %v345 = vsub.f32 %v120, %v344
  %346 = vmatmul.mubr.f32.gmra.mxu0 %v345
  %v347 = vpop.f32.mrf.mxu0
  %v348 = vadd.f32 %v274, %v347
  %v349 = vpop.f32.mrf.mxu0
  %350 = vdwg.mxu0
  %351 = vmatprep.subr.mxu0 0.0
  %352 = vmatpush1.xpose.msra.mxu0 0.0
  %353 = vmatprep.subr.mxu0 0.0
  %354 = vmatpush1.xpose.msra.mxu0 0.0
  %355 = vmatprep.subr.mxu0 0.0
  %356 = vmatpush1.xpose.msra.mxu0 0.0
  %357 = vmatprep.subr.mxu0 0.0
  %358 = vmatpush1.xpose.msra.mxu0 0.0
  %359 = vmatprep.subr.mxu0 0.0
  %360 = vmatpush1.xpose.msra.mxu0 0.0
  %361 = vmatprep.subr.mxu0 0.0
  %362 = vmatpush1.xpose.msra.mxu0 0.0
  %363 = vmatprep.subr.mxu0 0.0
  %364 = vmatpush1.xpose.msra.mxu0 0.0
  %365 = vmatprep.subr.mxu0 0.0
  %366 = vmatpush1.xpose.msra.mxu0 0.0
  %367 = vmatprep.subr.mxu0 0.0
  %368 = vmatpush1.xpose.msra.mxu0 0.0
  %369 = vmatprep.subr.mxu0 0.0
  %370 = vmatpush1.xpose.msra.mxu0 0.0
  %371 = vmatprep.subr.mxu0 0.0
  %372 = vmatpush1.xpose.msra.mxu0 0.0
  %373 = vmatprep.subr.mxu0 0.0
  %374 = vmatpush1.xpose.msra.mxu0 0.0
  %375 = vmatprep.subr.mxu0 0.0
  %376 = vmatpush1.xpose.msra.mxu0 0.0
  %377 = vmatprep.subr.mxu0 0.0
  %378 = vmatpush1.xpose.msra.mxu0 0.0
  %379 = vmatprep.subr.mxu0 0.0
  %380 = vmatpush1.xpose.msra.mxu0 0.0
  %381 = vmatprep.subr.mxu0 0.0
  %v382 = vand.u32 %v123, 4294901760
  %383 = vmatpush1.xpose.msra.mxu0 %v382
  %384 = vmatprep.subr.mxu0 0.0
  %385 = vmatpush2.xpose.msra.mxu0 0.0
  %386 = vmatprep.subr.mxu0 0.0
  %387 = vmatpush2.xpose.msra.mxu0 0.0
  %388 = vmatprep.subr.mxu0 0.0
  %389 = vmatpush2.xpose.msra.mxu0 0.0
  %390 = vmatprep.subr.mxu0 0.0
  %391 = vmatpush2.xpose.msra.mxu0 0.0
  %392 = vmatprep.subr.mxu0 0.0
  %393 = vmatpush2.xpose.msra.mxu0 0.0
  %394 = vmatprep.subr.mxu0 0.0
  %395 = vmatpush2.xpose.msra.mxu0 0.0
  %396 = vmatprep.subr.mxu0 0.0
  %397 = vmatpush2.xpose.msra.mxu0 0.0
  %398 = vmatprep.subr.mxu0 0.0
  %399 = vmatpush2.xpose.msra.mxu0 0.0
  %400 = vmatprep.subr.mxu0 0.0
  %401 = vmatpush2.xpose.msra.mxu0 0.0
  %402 = vmatprep.subr.mxu0 0.0
  %403 = vmatpush2.xpose.msra.mxu0 0.0
  %404 = vmatprep.subr.mxu0 0.0
  %405 = vmatpush2.xpose.msra.mxu0 0.0
  %406 = vmatprep.subr.mxu0 0.0
  %407 = vmatpush2.xpose.msra.mxu0 0.0
  %408 = vmatprep.subr.mxu0 0.0
  %409 = vmatpush2.xpose.msra.mxu0 0.0
  %410 = vmatprep.subr.mxu0 0.0
  %411 = vmatpush2.xpose.msra.mxu0 0.0
  %412 = vmatprep.subr.mxu0 0.0
  %413 = vmatpush2.xpose.msra.mxu0 0.0
  %414 = vmatprep.subr.mxu0 0.0
  %415 = vmatpush2.xpose.msra.mxu0 0.0
  %416 = vmatprep.mubr.f32.mxu0 0.0
  %v417 = vand.u32 %v120, 4294901760
  %v418 = vsub.f32 %v120, %v417
  %v419 = vand.u32 %v418, 4294901760
  %420 = vmatmul.mubr.f32.gmra.mxu0 %v419
  %v421 = vpop.f32.mrf.mxu0
  %v422 = vadd.f32 %v348, %v421
  %v423 = vpop.f32.mrf.mxu0
  %424 = vdwg.mxu0
  %425 = vmatprep.subr.mxu0 0.0
  %426 = vmatpush1.xpose.msra.mxu0 0.0
  %427 = vmatprep.subr.mxu0 0.0
  %428 = vmatpush1.xpose.msra.mxu0 0.0
  %429 = vmatprep.subr.mxu0 0.0
  %430 = vmatpush1.xpose.msra.mxu0 0.0
  %431 = vmatprep.subr.mxu0 0.0
  %432 = vmatpush1.xpose.msra.mxu0 0.0
  %433 = vmatprep.subr.mxu0 0.0
  %434 = vmatpush1.xpose.msra.mxu0 0.0
  %435 = vmatprep.subr.mxu0 0.0
  %436 = vmatpush1.xpose.msra.mxu0 0.0
  %437 = vmatprep.subr.mxu0 0.0
  %438 = vmatpush1.xpose.msra.mxu0 0.0
  %439 = vmatprep.subr.mxu0 0.0
  %440 = vmatpush1.xpose.msra.mxu0 0.0
  %441 = vmatprep.subr.mxu0 0.0
  %442 = vmatpush1.xpose.msra.mxu0 0.0
  %443 = vmatprep.subr.mxu0 0.0
  %444 = vmatpush1.xpose.msra.mxu0 0.0
  %445 = vmatprep.subr.mxu0 0.0
  %446 = vmatpush1.xpose.msra.mxu0 0.0
  %447 = vmatprep.subr.mxu0 0.0
  %448 = vmatpush1.xpose.msra.mxu0 0.0
  %449 = vmatprep.subr.mxu0 0.0
  %450 = vmatpush1.xpose.msra.mxu0 0.0
  %451 = vmatprep.subr.mxu0 0.0
  %452 = vmatpush1.xpose.msra.mxu0 0.0
  %453 = vmatprep.subr.mxu0 0.0
  %454 = vmatpush1.xpose.msra.mxu0 0.0
  %455 = vmatprep.subr.mxu0 0.0
  %v456 = vand.u32 %v123, 4294901760
  %v457 = vsub.f32 %v123, %v456
  %v458 = vand.u32 %v457, 4294901760
  %459 = vmatpush1.xpose.msra.mxu0 %v458
  %460 = vmatprep.subr.mxu0 0.0
  %461 = vmatpush2.xpose.msra.mxu0 0.0
  %462 = vmatprep.subr.mxu0 0.0
  %463 = vmatpush2.xpose.msra.mxu0 0.0
  %464 = vmatprep.subr.mxu0 0.0
  %465 = vmatpush2.xpose.msra.mxu0 0.0
  %466 = vmatprep.subr.mxu0 0.0
  %467 = vmatpush2.xpose.msra.mxu0 0.0
  %468 = vmatprep.subr.mxu0 0.0
  %469 = vmatpush2.xpose.msra.mxu0 0.0
  %470 = vmatprep.subr.mxu0 0.0
  %471 = vmatpush2.xpose.msra.mxu0 0.0
  %472 = vmatprep.subr.mxu0 0.0
  %473 = vmatpush2.xpose.msra.mxu0 0.0
  %474 = vmatprep.subr.mxu0 0.0
  %475 = vmatpush2.xpose.msra.mxu0 0.0
  %476 = vmatprep.subr.mxu0 0.0
  %477 = vmatpush2.xpose.msra.mxu0 0.0
  %478 = vmatprep.subr.mxu0 0.0
  %479 = vmatpush2.xpose.msra.mxu0 0.0
  %480 = vmatprep.subr.mxu0 0.0
  %481 = vmatpush2.xpose.msra.mxu0 0.0
  %482 = vmatprep.subr.mxu0 0.0
  %483 = vmatpush2.xpose.msra.mxu0 0.0
  %484 = vmatprep.subr.mxu0 0.0
  %485 = vmatpush2.xpose.msra.mxu0 0.0
  %486 = vmatprep.subr.mxu0 0.0
  %487 = vmatpush2.xpose.msra.mxu0 0.0
  %488 = vmatprep.subr.mxu0 0.0
  %489 = vmatpush2.xpose.msra.mxu0 0.0
  %490 = vmatprep.subr.mxu0 0.0
  %491 = vmatpush2.xpose.msra.mxu0 0.0
  %492 = vmatprep.mubr.f32.mxu0 0.0
  %v493 = vand.u32 %v120, 4294901760
  %494 = vmatmul.mubr.f32.gmra.mxu0 %v493
  %v495 = vpop.f32.mrf.mxu0
  %v496 = vadd.f32 %v422, %v495
  %v497 = vpop.f32.mrf.mxu0
  %498 = vdwg.mxu0
  %499 = vmatprep.subr.mxu0 0.0
  %500 = vmatpush1.xpose.msra.mxu0 0.0
  %501 = vmatprep.subr.mxu0 0.0
  %502 = vmatpush1.xpose.msra.mxu0 0.0
  %503 = vmatprep.subr.mxu0 0.0
  %504 = vmatpush1.xpose.msra.mxu0 0.0
  %505 = vmatprep.subr.mxu0 0.0
  %506 = vmatpush1.xpose.msra.mxu0 0.0
  %507 = vmatprep.subr.mxu0 0.0
  %508 = vmatpush1.xpose.msra.mxu0 0.0
  %509 = vmatprep.subr.mxu0 0.0
  %510 = vmatpush1.xpose.msra.mxu0 0.0
  %511 = vmatprep.subr.mxu0 0.0
  %512 = vmatpush1.xpose.msra.mxu0 0.0
  %513 = vmatprep.subr.mxu0 0.0
  %514 = vmatpush1.xpose.msra.mxu0 0.0
  %515 = vmatprep.subr.mxu0 0.0
  %516 = vmatpush1.xpose.msra.mxu0 0.0
  %517 = vmatprep.subr.mxu0 0.0
  %518 = vmatpush1.xpose.msra.mxu0 0.0
  %519 = vmatprep.subr.mxu0 0.0
  %520 = vmatpush1.xpose.msra.mxu0 0.0
  %521 = vmatprep.subr.mxu0 0.0
  %522 = vmatpush1.xpose.msra.mxu0 0.0
  %523 = vmatprep.subr.mxu0 0.0
  %524 = vmatpush1.xpose.msra.mxu0 0.0
  %525 = vmatprep.subr.mxu0 0.0
  %526 = vmatpush1.xpose.msra.mxu0 0.0
  %527 = vmatprep.subr.mxu0 0.0
  %528 = vmatpush1.xpose.msra.mxu0 0.0
  %529 = vmatprep.subr.mxu0 0.0
  %v530 = vand.u32 %v123, 4294901760
  %531 = vmatpush1.xpose.msra.mxu0 %v530
  %532 = vmatprep.subr.mxu0 0.0
  %533 = vmatpush2.xpose.msra.mxu0 0.0
  %534 = vmatprep.subr.mxu0 0.0
  %535 = vmatpush2.xpose.msra.mxu0 0.0
  %536 = vmatprep.subr.mxu0 0.0
  %537 = vmatpush2.xpose.msra.mxu0 0.0
  %538 = vmatprep.subr.mxu0 0.0
  %539 = vmatpush2.xpose.msra.mxu0 0.0
  %540 = vmatprep.subr.mxu0 0.0
  %541 = vmatpush2.xpose.msra.mxu0 0.0
  %542 = vmatprep.subr.mxu0 0.0
  %543 = vmatpush2.xpose.msra.mxu0 0.0
  %544 = vmatprep.subr.mxu0 0.0
  %545 = vmatpush2.xpose.msra.mxu0 0.0
  %546 = vmatprep.subr.mxu0 0.0
  %547 = vmatpush2.xpose.msra.mxu0 0.0
  %548 = vmatprep.subr.mxu0 0.0
  %549 = vmatpush2.xpose.msra.mxu0 0.0
  %550 = vmatprep.subr.mxu0 0.0
  %551 = vmatpush2.xpose.msra.mxu0 0.0
  %552 = vmatprep.subr.mxu0 0.0
  %553 = vmatpush2.xpose.msra.mxu0 0.0
  %554 = vmatprep.subr.mxu0 0.0
  %555 = vmatpush2.xpose.msra.mxu0 0.0
  %556 = vmatprep.subr.mxu0 0.0
  %557 = vmatpush2.xpose.msra.mxu0 0.0
  %558 = vmatprep.subr.mxu0 0.0
  %559 = vmatpush2.xpose.msra.mxu0 0.0
  %560 = vmatprep.subr.mxu0 0.0
  %561 = vmatpush2.xpose.msra.mxu0 0.0
  %562 = vmatprep.subr.mxu0 0.0
  %563 = vmatpush2.xpose.msra.mxu0 0.0
  %564 = vmatprep.mubr.f32.mxu0 0.0
  %v565 = vand.u32 %v120, 4294901760
  %566 = vmatmul.mubr.f32.gmra.mxu0 %v565
  %v567 = vpop.f32.mrf.mxu0
  %v568 = vadd.f32 %v496, %v567
  %v569 = vpop.f32.mrf.mxu0
  %570 = vdwg.mxu0
  %v571 = vmax.f32 %v568, 0.0
  %v572 = vld [vmem:[%s2] sm:$0xff]
  %v573 = vld [vmem:[%s2 + $0x8] sm:$0xff]
  %v574 = vld [vmem:[%s2 + $0x10] sm:$0xff]
  %v575 = vld [vmem:[%s2 + $0x18] sm:$0xff]
  %vm576 = vcmask 15360
  %v578 = vsel %vm576, %v571, 0
  %v581 = vsel %vm576, %v572, 0
  %v584 = vsel %vm576, %v573, 0
  %v587 = vsel %vm576, %v574, 0
  %v590 = vsel %vm576, %v575, 0
  %592 = vmatprep.subr.mxu0 0.0
  %593 = vmatpush1.xpose.msra.mxu0 0.0
  %594 = vmatprep.subr.mxu0 0.0
  %595 = vmatpush1.xpose.msra.mxu0 0.0
  %596 = vmatprep.subr.mxu0 0.0
  %597 = vmatpush1.xpose.msra.mxu0 0.0
  %598 = vmatprep.subr.mxu0 0.0
  %599 = vmatpush1.xpose.msra.mxu0 0.0
  %600 = vmatprep.subr.mxu0 0.0
  %601 = vmatpush1.xpose.msra.mxu0 0.0
  %602 = vmatprep.subr.mxu0 0.0
  %603 = vmatpush1.xpose.msra.mxu0 0.0
  %604 = vmatprep.subr.mxu0 0.0
  %605 = vmatpush1.xpose.msra.mxu0 0.0
  %606 = vmatprep.subr.mxu0 0.0
  %607 = vmatpush1.xpose.msra.mxu0 0.0
  %608 = vmatprep.subr.mxu0 0.0
  %609 = vmatpush1.xpose.msra.mxu0 0.0
  %610 = vmatprep.subr.mxu0 0.0
  %611 = vmatpush1.xpose.msra.mxu0 0.0
  %612 = vmatprep.subr.mxu0 0.0
  %613 = vmatpush1.xpose.msra.mxu0 0.0
  %614 = vmatprep.subr.mxu0 0.0
  %615 = vmatpush1.xpose.msra.mxu0 0.0
  %616 = vmatprep.subr.mxu0 0.0
  %v617 = vand.u32 %v590, 4294901760
  %618 = vmatpush1.xpose.msra.mxu0 %v617
  %619 = vmatprep.subr.mxu0 0.0
  %v620 = vand.u32 %v587, 4294901760
  %621 = vmatpush1.xpose.msra.mxu0 %v620
  %622 = vmatprep.subr.mxu0 0.0
  %v623 = vand.u32 %v584, 4294901760
  %624 = vmatpush1.xpose.msra.mxu0 %v623
  %625 = vmatprep.subr.mxu0 0.0
  %v626 = vand.u32 %v581, 4294901760
  %627 = vmatpush1.xpose.msra.mxu0 %v626
  %628 = vmatprep.subr.mxu0 0.0
  %629 = vmatpush2.xpose.msra.mxu0 0.0
  %630 = vmatprep.subr.mxu0 0.0
  %631 = vmatpush2.xpose.msra.mxu0 0.0
  %632 = vmatprep.subr.mxu0 0.0
  %633 = vmatpush2.xpose.msra.mxu0 0.0
  %634 = vmatprep.subr.mxu0 0.0
  %635 = vmatpush2.xpose.msra.mxu0 0.0
  %636 = vmatprep.subr.mxu0 0.0
  %637 = vmatpush2.xpose.msra.mxu0 0.0
  %638 = vmatprep.subr.mxu0 0.0
  %639 = vmatpush2.xpose.msra.mxu0 0.0
  %640 = vmatprep.subr.mxu0 0.0
  %641 = vmatpush2.xpose.msra.mxu0 0.0
  %642 = vmatprep.subr.mxu0 0.0
  %643 = vmatpush2.xpose.msra.mxu0 0.0
  %644 = vmatprep.subr.mxu0 0.0
  %645 = vmatpush2.xpose.msra.mxu0 0.0
  %646 = vmatprep.subr.mxu0 0.0
  %647 = vmatpush2.xpose.msra.mxu0 0.0
  %648 = vmatprep.subr.mxu0 0.0
  %649 = vmatpush2.xpose.msra.mxu0 0.0
  %650 = vmatprep.subr.mxu0 0.0
  %651 = vmatpush2.xpose.msra.mxu0 0.0
  %652 = vmatprep.subr.mxu0 0.0
  %653 = vmatpush2.xpose.msra.mxu0 0.0
  %654 = vmatprep.subr.mxu0 0.0
  %655 = vmatpush2.xpose.msra.mxu0 0.0
  %656 = vmatprep.subr.mxu0 0.0
  %657 = vmatpush2.xpose.msra.mxu0 0.0
  %658 = vmatprep.subr.mxu0 0.0
  %659 = vmatpush2.xpose.msra.mxu0 0.0
  %660 = vmatprep.mubr.f32.mxu0 0.0
  %v661 = vand.u32 %v578, 4294901760
  %v662 = vsub.f32 %v578, %v661
  %v663 = vand.u32 %v662, 4294901760
  %v664 = vsub.f32 %v662, %v663
  %v665 = vand.u32 %v664, 4294901760
  %666 = vmatmul.mubr.f32.gmra.mxu0 %v665
  %v667 = vpop.f32.mrf.mxu0
  %v668 = vadd.f32 0.0, %v667
  %v669 = vpop.f32.mrf.mxu0
  %670 = vdwg.mxu0
  %671 = vmatprep.subr.mxu0 0.0
  %672 = vmatpush1.xpose.msra.mxu0 0.0
  %673 = vmatprep.subr.mxu0 0.0
  %674 = vmatpush1.xpose.msra.mxu0 0.0
  %675 = vmatprep.subr.mxu0 0.0
  %676 = vmatpush1.xpose.msra.mxu0 0.0
  %677 = vmatprep.subr.mxu0 0.0
  %678 = vmatpush1.xpose.msra.mxu0 0.0
  %679 = vmatprep.subr.mxu0 0.0
  %680 = vmatpush1.xpose.msra.mxu0 0.0
  %681 = vmatprep.subr.mxu0 0.0
  %682 = vmatpush1.xpose.msra.mxu0 0.0
  %683 = vmatprep.subr.mxu0 0.0
  %684 = vmatpush1.xpose.msra.mxu0 0.0
  %685 = vmatprep.subr.mxu0 0.0
  %686 = vmatpush1.xpose.msra.mxu0 0.0
  %687 = vmatprep.subr.mxu0 0.0
  %688 = vmatpush1.xpose.msra.mxu0 0.0
  %689 = vmatprep.subr.mxu0 0.0
  %690 = vmatpush1.xpose.msra.mxu0 0.0
  %691 = vmatprep.subr.mxu0 0.0
  %692 = vmatpush1.xpose.msra.mxu0 0.0
  %693 = vmatprep.subr.mxu0 0.0
  %694 = vmatpush1.xpose.msra.mxu0 0.0
  %695 = vmatprep.subr.mxu0 0.0
  %v696 = vand.u32 %v590, 4294901760
  %v697 = vsub.f32 %v590, %v696
  %v698 = vand.u32 %v697, 4294901760
  %v699 = vsub.f32 %v697, %v698
  %v700 = vand.u32 %v699, 4294901760
  %701 = vmatpush1.xpose.msra.mxu0 %v700
  %702 = vmatprep.subr.mxu0 0.0
  %v703 = vand.u32 %v587, 4294901760
  %v704 = vsub.f32 %v587, %v703
  %v705 = vand.u32 %v704, 4294901760
  %v706 = vsub.f32 %v704, %v705
  %v707 = vand.u32 %v706, 4294901760
  %708 = vmatpush1.xpose.msra.mxu0 %v707
  %709 = vmatprep.subr.mxu0 0.0
  %v710 = vand.u32 %v584, 4294901760
  %v711 = vsub.f32 %v584, %v710
  %v712 = vand.u32 %v711, 4294901760
  %v713 = vsub.f32 %v711, %v712
  %v714 = vand.u32 %v713, 4294901760
  %715 = vmatpush1.xpose.msra.mxu0 %v714
  %716 = vmatprep.subr.mxu0 0.0
  %v717 = vand.u32 %v581, 4294901760
  %v718 = vsub.f32 %v581, %v717
  %v719 = vand.u32 %v718, 4294901760
  %v720 = vsub.f32 %v718, %v719
  %v721 = vand.u32 %v720, 4294901760
  %722 = vmatpush1.xpose.msra.mxu0 %v721
  %723 = vmatprep.subr.mxu0 0.0
  %724 = vmatpush2.xpose.msra.mxu0 0.0
  %725 = vmatprep.subr.mxu0 0.0
  %726 = vmatpush2.xpose.msra.mxu0 0.0
  %727 = vmatprep.subr.mxu0 0.0
  %728 = vmatpush2.xpose.msra.mxu0 0.0
  %729 = vmatprep.subr.mxu0 0.0
  %730 = vmatpush2.xpose.msra.mxu0 0.0
  %731 = vmatprep.subr.mxu0 0.0
  %732 = vmatpush2.xpose.msra.mxu0 0.0
  %733 = vmatprep.subr.mxu0 0.0
  %734 = vmatpush2.xpose.msra.mxu0 0.0
  %735 = vmatprep.subr.mxu0 0.0
  %736 = vmatpush2.xpose.msra.mxu0 0.0
  %737 = vmatprep.subr.mxu0 0.0
  %738 = vmatpush2.xpose.msra.mxu0 0.0
  %739 = vmatprep.subr.mxu0 0.0
  %740 = vmatpush2.xpose.msra.mxu0 0.0
  %741 = vmatprep.subr.mxu0 0.0
  %742 = vmatpush2.xpose.msra.mxu0 0.0
  %743 = vmatprep.subr.mxu0 0.0
  %744 = vmatpush2.xpose.msra.mxu0 0.0
  %745 = vmatprep.subr.mxu0 0.0
  %746 = vmatpush2.xpose.msra.mxu0 0.0
  %747 = vmatprep.subr.mxu0 0.0
  %748 = vmatpush2.xpose.msra.mxu0 0.0
  %749 = vmatprep.subr.mxu0 0.0
  %750 = vmatpush2.xpose.msra.mxu0 0.0
  %751 = vmatprep.subr.mxu0 0.0
  %752 = vmatpush2.xpose.msra.mxu0 0.0
  %753 = vmatprep.subr.mxu0 0.0
  %754 = vmatpush2.xpose.msra.mxu0 0.0
  %755 = vmatprep.mubr.f32.mxu0 0.0
  %v756 = vand.u32 %v578, 4294901760
  %757 = vmatmul.mubr.f32.gmra.mxu0 %v756
  %v758 = vpop.f32.mrf.mxu0
  %v759 = vadd.f32 %v668, %v758
  %v760 = vpop.f32.mrf.mxu0
  %761 = vdwg.mxu0
  %762 = vmatprep.subr.mxu0 0.0
  %763 = vmatpush1.xpose.msra.mxu0 0.0
  %764 = vmatprep.subr.mxu0 0.0
  %765 = vmatpush1.xpose.msra.mxu0 0.0
  %766 = vmatprep.subr.mxu0 0.0
  %767 = vmatpush1.xpose.msra.mxu0 0.0
  %768 = vmatprep.subr.mxu0 0.0
  %769 = vmatpush1.xpose.msra.mxu0 0.0
  %770 = vmatprep.subr.mxu0 0.0
  %771 = vmatpush1.xpose.msra.mxu0 0.0
  %772 = vmatprep.subr.mxu0 0.0
  %773 = vmatpush1.xpose.msra.mxu0 0.0
  %774 = vmatprep.subr.mxu0 0.0
  %775 = vmatpush1.xpose.msra.mxu0 0.0
  %776 = vmatprep.subr.mxu0 0.0
  %777 = vmatpush1.xpose.msra.mxu0 0.0
  %778 = vmatprep.subr.mxu0 0.0
  %779 = vmatpush1.xpose.msra.mxu0 0.0
  %780 = vmatprep.subr.mxu0 0.0
  %781 = vmatpush1.xpose.msra.mxu0 0.0
  %782 = vmatprep.subr.mxu0 0.0
  %783 = vmatpush1.xpose.msra.mxu0 0.0
  %784 = vmatprep.subr.mxu0 0.0
  %785 = vmatpush1.xpose.msra.mxu0 0.0
  %786 = vmatprep.subr.mxu0 0.0
  %v787 = vand.u32 %v590, 4294901760
  %v788 = vsub.f32 %v590, %v787
  %789 = vmatpush1.xpose.msra.mxu0 %v788
  %790 = vmatprep.subr.mxu0 0.0
  %v791 = vand.u32 %v587, 4294901760
  %v792 = vsub.f32 %v587, %v791
  %793 = vmatpush1.xpose.msra.mxu0 %v792
  %794 = vmatprep.subr.mxu0 0.0
  %v795 = vand.u32 %v584, 4294901760
  %v796 = vsub.f32 %v584, %v795
  %797 = vmatpush1.xpose.msra.mxu0 %v796
  %798 = vmatprep.subr.mxu0 0.0
  %v799 = vand.u32 %v581, 4294901760
  %v800 = vsub.f32 %v581, %v799
  %801 = vmatpush1.xpose.msra.mxu0 %v800
  %802 = vmatprep.subr.mxu0 0.0
  %803 = vmatpush2.xpose.msra.mxu0 0.0
  %804 = vmatprep.subr.mxu0 0.0
  %805 = vmatpush2.xpose.msra.mxu0 0.0
  %806 = vmatprep.subr.mxu0 0.0
  %807 = vmatpush2.xpose.msra.mxu0 0.0
  %808 = vmatprep.subr.mxu0 0.0
  %809 = vmatpush2.xpose.msra.mxu0 0.0
  %810 = vmatprep.subr.mxu0 0.0
  %811 = vmatpush2.xpose.msra.mxu0 0.0
  %812 = vmatprep.subr.mxu0 0.0
  %813 = vmatpush2.xpose.msra.mxu0 0.0
  %814 = vmatprep.subr.mxu0 0.0
  %815 = vmatpush2.xpose.msra.mxu0 0.0
  %816 = vmatprep.subr.mxu0 0.0
  %817 = vmatpush2.xpose.msra.mxu0 0.0
  %818 = vmatprep.subr.mxu0 0.0
  %819 = vmatpush2.xpose.msra.mxu0 0.0
  %820 = vmatprep.subr.mxu0 0.0
  %821 = vmatpush2.xpose.msra.mxu0 0.0
  %822 = vmatprep.subr.mxu0 0.0
  %823 = vmatpush2.xpose.msra.mxu0 0.0
  %824 = vmatprep.subr.mxu0 0.0
  %825 = vmatpush2.xpose.msra.mxu0 0.0
  %826 = vmatprep.subr.mxu0 0.0
  %827 = vmatpush2.xpose.msra.mxu0 0.0
  %828 = vmatprep.subr.mxu0 0.0
  %829 = vmatpush2.xpose.msra.mxu0 0.0
  %830 = vmatprep.subr.mxu0 0.0
  %831 = vmatpush2.xpose.msra.mxu0 0.0
  %832 = vmatprep.subr.mxu0 0.0
  %833 = vmatpush2.xpose.msra.mxu0 0.0
  %834 = vmatprep.mubr.f32.mxu0 0.0
  %v835 = vand.u32 %v578, 4294901760
  %v836 = vsub.f32 %v578, %v835
  %837 = vmatmul.mubr.f32.gmra.mxu0 %v836
  %v838 = vpop.f32.mrf.mxu0
  %v839 = vadd.f32 %v759, %v838
  %v840 = vpop.f32.mrf.mxu0
  %841 = vdwg.mxu0
  %842 = vmatprep.subr.mxu0 0.0
  %843 = vmatpush1.xpose.msra.mxu0 0.0
  %844 = vmatprep.subr.mxu0 0.0
  %845 = vmatpush1.xpose.msra.mxu0 0.0
  %846 = vmatprep.subr.mxu0 0.0
  %847 = vmatpush1.xpose.msra.mxu0 0.0
  %848 = vmatprep.subr.mxu0 0.0
  %849 = vmatpush1.xpose.msra.mxu0 0.0
  %850 = vmatprep.subr.mxu0 0.0
  %851 = vmatpush1.xpose.msra.mxu0 0.0
  %852 = vmatprep.subr.mxu0 0.0
  %853 = vmatpush1.xpose.msra.mxu0 0.0
  %854 = vmatprep.subr.mxu0 0.0
  %855 = vmatpush1.xpose.msra.mxu0 0.0
  %856 = vmatprep.subr.mxu0 0.0
  %857 = vmatpush1.xpose.msra.mxu0 0.0
  %858 = vmatprep.subr.mxu0 0.0
  %859 = vmatpush1.xpose.msra.mxu0 0.0
  %860 = vmatprep.subr.mxu0 0.0
  %861 = vmatpush1.xpose.msra.mxu0 0.0
  %862 = vmatprep.subr.mxu0 0.0
  %863 = vmatpush1.xpose.msra.mxu0 0.0
  %864 = vmatprep.subr.mxu0 0.0
  %865 = vmatpush1.xpose.msra.mxu0 0.0
  %866 = vmatprep.subr.mxu0 0.0
  %v867 = vand.u32 %v590, 4294901760
  %868 = vmatpush1.xpose.msra.mxu0 %v867
  %869 = vmatprep.subr.mxu0 0.0
  %v870 = vand.u32 %v587, 4294901760
  %871 = vmatpush1.xpose.msra.mxu0 %v870
  %872 = vmatprep.subr.mxu0 0.0
  %v873 = vand.u32 %v584, 4294901760
  %874 = vmatpush1.xpose.msra.mxu0 %v873
  %875 = vmatprep.subr.mxu0 0.0
  %v876 = vand.u32 %v581, 4294901760
  %877 = vmatpush1.xpose.msra.mxu0 %v876
  %878 = vmatprep.subr.mxu0 0.0
  %879 = vmatpush2.xpose.msra.mxu0 0.0
  %880 = vmatprep.subr.mxu0 0.0
  %881 = vmatpush2.xpose.msra.mxu0 0.0
  %882 = vmatprep.subr.mxu0 0.0
  %883 = vmatpush2.xpose.msra.mxu0 0.0
  %884 = vmatprep.subr.mxu0 0.0
  %885 = vmatpush2.xpose.msra.mxu0 0.0
  %886 = vmatprep.subr.mxu0 0.0
  %887 = vmatpush2.xpose.msra.mxu0 0.0
  %888 = vmatprep.subr.mxu0 0.0
  %889 = vmatpush2.xpose.msra.mxu0 0.0
  %890 = vmatprep.subr.mxu0 0.0
  %891 = vmatpush2.xpose.msra.mxu0 0.0
  %892 = vmatprep.subr.mxu0 0.0
  %893 = vmatpush2.xpose.msra.mxu0 0.0
  %894 = vmatprep.subr.mxu0 0.0
  %895 = vmatpush2.xpose.msra.mxu0 0.0
  %896 = vmatprep.subr.mxu0 0.0
  %897 = vmatpush2.xpose.msra.mxu0 0.0
  %898 = vmatprep.subr.mxu0 0.0
  %899 = vmatpush2.xpose.msra.mxu0 0.0
  %900 = vmatprep.subr.mxu0 0.0
  %901 = vmatpush2.xpose.msra.mxu0 0.0
  %902 = vmatprep.subr.mxu0 0.0
  %903 = vmatpush2.xpose.msra.mxu0 0.0
  %904 = vmatprep.subr.mxu0 0.0
  %905 = vmatpush2.xpose.msra.mxu0 0.0
  %906 = vmatprep.subr.mxu0 0.0
  %907 = vmatpush2.xpose.msra.mxu0 0.0
  %908 = vmatprep.subr.mxu0 0.0
  %909 = vmatpush2.xpose.msra.mxu0 0.0
  %910 = vmatprep.mubr.f32.mxu0 0.0
  %v911 = vand.u32 %v578, 4294901760
  %v912 = vsub.f32 %v578, %v911
  %v913 = vand.u32 %v912, 4294901760
  %914 = vmatmul.mubr.f32.gmra.mxu0 %v913
  %v915 = vpop.f32.mrf.mxu0
  %v916 = vadd.f32 %v839, %v915
  %v917 = vpop.f32.mrf.mxu0
  %918 = vdwg.mxu0
  %919 = vmatprep.subr.mxu0 0.0
  %920 = vmatpush1.xpose.msra.mxu0 0.0
  %921 = vmatprep.subr.mxu0 0.0
  %922 = vmatpush1.xpose.msra.mxu0 0.0
  %923 = vmatprep.subr.mxu0 0.0
  %924 = vmatpush1.xpose.msra.mxu0 0.0
  %925 = vmatprep.subr.mxu0 0.0
  %926 = vmatpush1.xpose.msra.mxu0 0.0
  %927 = vmatprep.subr.mxu0 0.0
  %928 = vmatpush1.xpose.msra.mxu0 0.0
  %929 = vmatprep.subr.mxu0 0.0
  %930 = vmatpush1.xpose.msra.mxu0 0.0
  %931 = vmatprep.subr.mxu0 0.0
  %932 = vmatpush1.xpose.msra.mxu0 0.0
  %933 = vmatprep.subr.mxu0 0.0
  %934 = vmatpush1.xpose.msra.mxu0 0.0
  %935 = vmatprep.subr.mxu0 0.0
  %936 = vmatpush1.xpose.msra.mxu0 0.0
  %937 = vmatprep.subr.mxu0 0.0
  %938 = vmatpush1.xpose.msra.mxu0 0.0
  %939 = vmatprep.subr.mxu0 0.0
  %940 = vmatpush1.xpose.msra.mxu0 0.0
  %941 = vmatprep.subr.mxu0 0.0
  %942 = vmatpush1.xpose.msra.mxu0 0.0
  %943 = vmatprep.subr.mxu0 0.0
  %v944 = vand.u32 %v590, 4294901760
  %v945 = vsub.f32 %v590, %v944
  %v946 = vand.u32 %v945, 4294901760
  %947 = vmatpush1.xpose.msra.mxu0 %v946
  %948 = vmatprep.subr.mxu0 0.0
  %v949 = vand.u32 %v587, 4294901760
  %v950 = vsub.f32 %v587, %v949
  %v951 = vand.u32 %v950, 4294901760
  %952 = vmatpush1.xpose.msra.mxu0 %v951
  %953 = vmatprep.subr.mxu0 0.0
  %v954 = vand.u32 %v584, 4294901760
  %v955 = vsub.f32 %v584, %v954
  %v956 = vand.u32 %v955, 4294901760
  %957 = vmatpush1.xpose.msra.mxu0 %v956
  %958 = vmatprep.subr.mxu0 0.0
  %v959 = vand.u32 %v581, 4294901760
  %v960 = vsub.f32 %v581, %v959
  %v961 = vand.u32 %v960, 4294901760
  %962 = vmatpush1.xpose.msra.mxu0 %v961
  %963 = vmatprep.subr.mxu0 0.0
  %964 = vmatpush2.xpose.msra.mxu0 0.0
  %965 = vmatprep.subr.mxu0 0.0
  %966 = vmatpush2.xpose.msra.mxu0 0.0
  %967 = vmatprep.subr.mxu0 0.0
  %968 = vmatpush2.xpose.msra.mxu0 0.0
  %969 = vmatprep.subr.mxu0 0.0
  %970 = vmatpush2.xpose.msra.mxu0 0.0
  %971 = vmatprep.subr.mxu0 0.0
  %972 = vmatpush2.xpose.msra.mxu0 0.0
  %973 = vmatprep.subr.mxu0 0.0
  %974 = vmatpush2.xpose.msra.mxu0 0.0
  %975 = vmatprep.subr.mxu0 0.0
  %976 = vmatpush2.xpose.msra.mxu0 0.0
  %977 = vmatprep.subr.mxu0 0.0
  %978 = vmatpush2.xpose.msra.mxu0 0.0
  %979 = vmatprep.subr.mxu0 0.0
  %980 = vmatpush2.xpose.msra.mxu0 0.0
  %981 = vmatprep.subr.mxu0 0.0
  %982 = vmatpush2.xpose.msra.mxu0 0.0
  %983 = vmatprep.subr.mxu0 0.0
  %984 = vmatpush2.xpose.msra.mxu0 0.0
  %985 = vmatprep.subr.mxu0 0.0
  %986 = vmatpush2.xpose.msra.mxu0 0.0
  %987 = vmatprep.subr.mxu0 0.0
  %988 = vmatpush2.xpose.msra.mxu0 0.0
  %989 = vmatprep.subr.mxu0 0.0
  %990 = vmatpush2.xpose.msra.mxu0 0.0
  %991 = vmatprep.subr.mxu0 0.0
  %992 = vmatpush2.xpose.msra.mxu0 0.0
  %993 = vmatprep.subr.mxu0 0.0
  %994 = vmatpush2.xpose.msra.mxu0 0.0
  %995 = vmatprep.mubr.f32.mxu0 0.0
  %v996 = vand.u32 %v578, 4294901760
  %997 = vmatmul.mubr.f32.gmra.mxu0 %v996
  %v998 = vpop.f32.mrf.mxu0
  %v999 = vadd.f32 %v916, %v998
  %v1000 = vpop.f32.mrf.mxu0
  %1001 = vdwg.mxu0
  %1002 = vmatprep.subr.mxu0 0.0
  %1003 = vmatpush1.xpose.msra.mxu0 0.0
  %1004 = vmatprep.subr.mxu0 0.0
  %1005 = vmatpush1.xpose.msra.mxu0 0.0
  %1006 = vmatprep.subr.mxu0 0.0
  %1007 = vmatpush1.xpose.msra.mxu0 0.0
  %1008 = vmatprep.subr.mxu0 0.0
  %1009 = vmatpush1.xpose.msra.mxu0 0.0
  %1010 = vmatprep.subr.mxu0 0.0
  %1011 = vmatpush1.xpose.msra.mxu0 0.0
  %1012 = vmatprep.subr.mxu0 0.0
  %1013 = vmatpush1.xpose.msra.mxu0 0.0
  %1014 = vmatprep.subr.mxu0 0.0
  %1015 = vmatpush1.xpose.msra.mxu0 0.0
  %1016 = vmatprep.subr.mxu0 0.0
  %1017 = vmatpush1.xpose.msra.mxu0 0.0
  %1018 = vmatprep.subr.mxu0 0.0
  %1019 = vmatpush1.xpose.msra.mxu0 0.0
  %1020 = vmatprep.subr.mxu0 0.0
  %1021 = vmatpush1.xpose.msra.mxu0 0.0
  %1022 = vmatprep.subr.mxu0 0.0
  %1023 = vmatpush1.xpose.msra.mxu0 0.0
  %1024 = vmatprep.subr.mxu0 0.0
  %1025 = vmatpush1.xpose.msra.mxu0 0.0
  %1026 = vmatprep.subr.mxu0 0.0
  %v1027 = vand.u32 %v590, 4294901760
  %1028 = vmatpush1.xpose.msra.mxu0 %v1027
  %1029 = vmatprep.subr.mxu0 0.0
  %v1030 = vand.u32 %v587, 4294901760
  %1031 = vmatpush1.xpose.msra.mxu0 %v1030
  %1032 = vmatprep.subr.mxu0 0.0
  %v1033 = vand.u32 %v584, 4294901760
  %1034 = vmatpush1.xpose.msra.mxu0 %v1033
  %1035 = vmatprep.subr.mxu0 0.0
  %v1036 = vand.u32 %v581, 4294901760
  %1037 = vmatpush1.xpose.msra.mxu0 %v1036
  %1038 = vmatprep.subr.mxu0 0.0
  %1039 = vmatpush2.xpose.msra.mxu0 0.0
  %1040 = vmatprep.subr.mxu0 0.0
  %1041 = vmatpush2.xpose.msra.mxu0 0.0
  %1042 = vmatprep.subr.mxu0 0.0
  %1043 = vmatpush2.xpose.msra.mxu0 0.0
  %1044 = vmatprep.subr.mxu0 0.0
  %1045 = vmatpush2.xpose.msra.mxu0 0.0
  %1046 = vmatprep.subr.mxu0 0.0
  %1047 = vmatpush2.xpose.msra.mxu0 0.0
  %1048 = vmatprep.subr.mxu0 0.0
  %1049 = vmatpush2.xpose.msra.mxu0 0.0
  %1050 = vmatprep.subr.mxu0 0.0
  %1051 = vmatpush2.xpose.msra.mxu0 0.0
  %1052 = vmatprep.subr.mxu0 0.0
  %1053 = vmatpush2.xpose.msra.mxu0 0.0
  %1054 = vmatprep.subr.mxu0 0.0
  %1055 = vmatpush2.xpose.msra.mxu0 0.0
  %1056 = vmatprep.subr.mxu0 0.0
  %1057 = vmatpush2.xpose.msra.mxu0 0.0
  %1058 = vmatprep.subr.mxu0 0.0
  %1059 = vmatpush2.xpose.msra.mxu0 0.0
  %1060 = vmatprep.subr.mxu0 0.0
  %1061 = vmatpush2.xpose.msra.mxu0 0.0
  %1062 = vmatprep.subr.mxu0 0.0
  %1063 = vmatpush2.xpose.msra.mxu0 0.0
  %1064 = vmatprep.subr.mxu0 0.0
  %1065 = vmatpush2.xpose.msra.mxu0 0.0
  %1066 = vmatprep.subr.mxu0 0.0
  %1067 = vmatpush2.xpose.msra.mxu0 0.0
  %1068 = vmatprep.subr.mxu0 0.0
  %1069 = vmatpush2.xpose.msra.mxu0 0.0
  %1070 = vmatprep.mubr.f32.mxu0 0.0
  %v1071 = vand.u32 %v578, 4294901760
  %1072 = vmatmul.mubr.f32.gmra.mxu0 %v1071
  %v1073 = vpop.f32.mrf.mxu0
  %v1074 = vadd.f32 %v999, %v1073
  %v1075 = vpop.f32.mrf.mxu0
  %1076 = vdwg.mxu0
  %v1077 = vxor.u32 %v1074, 2147483648
  %v1078 = vmul.f32 %v1077, 1.442695
  %v1079 = vpow.pop %v1078
  %v1080 = vadd.f32 %v1079, 1.0
  %v1081 = vrcp.pop %v1080
  %v1082 = vmul.f32 1.0, %v1081
  %v1083 = vlaneseq
  %v1084 = vshrl.u32 %v1083, 7
  %v1085 = vsub.s32 0, %v1084
  %v1086 = vrot.slane %v1082, %v1085
  %1088 = vbcast.lane.b32.xlu0 %v1086, 256
  %v1089 = vpop.permute.xlu0 %1088
  %s1091 = sor.u32 256, 8
  %1092 = vbcast.lane.b32.xlu0 %v1086, %s1091
  %v1093 = vpop.permute.xlu0 %1092
  %s1095 = sor.u32 256, 16
  %1096 = vbcast.lane.b32.xlu0 %v1086, %s1095
  %v1097 = vpop.permute.xlu0 %1096
  %s1099 = sor.u32 256, 24
  %1100 = vbcast.lane.b32.xlu0 %v1086, %s1099
  %v1101 = vpop.permute.xlu0 %1100
  %v1102 = vlaneseq
  %v1103 = vshrl.u32 %v1102, 7
  %v1104 = vsub.s32 1, %v1103
  %v1105 = vrot.slane %v1082, %v1104
  %1107 = vbcast.lane.b32.xlu0 %v1105, 256
  %v1108 = vpop.permute.xlu0 %1107
  %s1110 = sor.u32 256, 8
  %1111 = vbcast.lane.b32.xlu0 %v1105, %s1110
  %v1112 = vpop.permute.xlu0 %1111
  %s1114 = sor.u32 256, 16
  %1115 = vbcast.lane.b32.xlu0 %v1105, %s1114
  %v1116 = vpop.permute.xlu0 %1115
  %s1118 = sor.u32 256, 24
  %1119 = vbcast.lane.b32.xlu0 %v1105, %s1118
  %v1120 = vpop.permute.xlu0 %1119
  %v1121 = vmul.f32 %v14, %v1089
  %v1122 = vmul.f32 %v15, %v1089
  %v1123 = vmul.f32 %v16, %v1093
  %v1124 = vmul.f32 %v17, %v1093
  %v1125 = vmul.f32 %v18, %v1097
  %v1126 = vmul.f32 %v19, %v1097
  %v1127 = vmul.f32 %v20, %v1101
  %v1128 = vmul.f32 %v21, %v1101
  %v1129 = vmul.f32 %v22, %v1108
  %v1130 = vmul.f32 %v23, %v1108
  %v1131 = vmul.f32 %v24, %v1112
  %v1132 = vmul.f32 %v25, %v1112
  %v1133 = vmul.f32 %v26, %v1116
  %v1134 = vmul.f32 %v27, %v1116
  %v1135 = vmul.f32 %v28, %v1120
  %v1136 = vmul.f32 %v29, %v1120
  %1137 = vst [vmem:[%s3] sm:$0xff] %v1121
  %1138 = vst [vmem:[%s3 + $0x8] sm:$0xff] %v1122
  %1139 = vst [vmem:[%s3 + $0x10] sm:$0xff] %v1123
  %1140 = vst [vmem:[%s3 + $0x18] sm:$0xff] %v1124
  %1141 = vst [vmem:[%s3 + $0x20] sm:$0xff] %v1125
  %1142 = vst [vmem:[%s3 + $0x28] sm:$0xff] %v1126
  %1143 = vst [vmem:[%s3 + $0x30] sm:$0xff] %v1127
  %1144 = vst [vmem:[%s3 + $0x38] sm:$0xff] %v1128
  %1145 = vst [vmem:[%s3 + $0x40] sm:$0xff] %v1129
  %1146 = vst [vmem:[%s3 + $0x48] sm:$0xff] %v1130
  %1147 = vst [vmem:[%s3 + $0x50] sm:$0xff] %v1131
  %1148 = vst [vmem:[%s3 + $0x58] sm:$0xff] %v1132
  %1149 = vst [vmem:[%s3 + $0x60] sm:$0xff] %v1133
  %1150 = vst [vmem:[%s3 + $0x68] sm:$0xff] %v1134
  %1151 = vst [vmem:[%s3 + $0x70] sm:$0xff] %v1135
  %1152 = vst [vmem:[%s3 + $0x78] sm:$0xff] %v1136
  // Predicated region
  $region14: #{channel_attention.1} parent=0 // pred_check
    _
  $region15: #{channel_attention.1} parent=0 // pred_check_branch
    %1154 = sbr.rel (0) target = $region17
  $region16: #{channel_attention.1} parent=0 // pred_region
    _
  $region17: #{channel_attention.1} parent=0 // pred_fallthru
    _
  // Predicated region
  $region18: #{channel_attention.1} parent=0 // pred_check
    _
  $region19: #{channel_attention.1} parent=0 // pred_check_branch
    %1156 = sbr.rel (0) target = $region21
  $region20: #{channel_attention.1} parent=0 // pred_region
    _
  $region21: #{channel_attention.1} parent=0 // pred_fallthru
    _

</llo_original>
